<compile_context>
chip_gen: v6e
topology: v6e:2x2x1
jax: 0.10.0
libtpu: 0.0.40
codegen_flags: <defaults>
</compile_context>

<pallas_src>
import functools

import numpy as np

import jax
import jax.numpy as jnp
from jax.experimental import pallas as pl
from jax.experimental.pallas import tpu as pltpu

ATOM_FEATURE_DIMS = [119, 4, 12, 12, 10, 6, 6, 2, 2]
BOND_FEATURE_DIMS = [5, 6, 2]
BN_EPS = 1e-5
LANE = 128


def round_up(x, m):
    return ((x + m - 1) // m) * m


# ----------------------------------------------------------------------------
# Pallas kernel: one GIN layer
#   grid = (node_tiles, edge_tile_steps); node axis parallel, edge axis reduction.
# ----------------------------------------------------------------------------
def gin_layer_kernel(ts_ref, tc_ref,                  # scalar prefetch (SMEM): per-node-tile
                     dst_ref, xj_ref, ee_ref,         # edge-tile inputs
                     h_ref, eps_ref,                  # node tile + (1,1) SMEM scalar
                     w1_ref, c1_ref, w2_ref, c2_ref,  # BN-folded MLP params (w* in bf16)
                     out_ref,                         # node-tile output
                     acc_ref,                         # VMEM f32 accumulator [tn, D]
                     *, tn, apply_relu):
    i = pl.program_id(0)          # node-tile index  ("parallel")
    k = pl.program_id(1)          # edge-tile step   ("arbitrary" reduction)

    @pl.when(k == 0)
    def _():
        acc_ref[...] = jnp.zeros_like(acc_ref)

    # Accumulate this edge tile's messages into the node-tile accumulator.
    # Skipped when this node tile has fewer edge tiles than the grid's max.
    @pl.when(k < tc_ref[i])
    def _():
        # message = relu(x_j + bond_emb)   (f32 on the VPU; v5e-safe)
        msg = jnp.maximum(xj_ref[...] + ee_ref[...], 0.0)                # [te, D]
        # local one-hot scatter for this node tile (out-of-tile / padded edges -> 0 rows)
        local = dst_ref[...] - i * tn                                    # [1, te] int32
        rows = jax.lax.broadcasted_iota(jnp.int32, (tn, local.shape[1]), 0)
        onehot = (rows == local).astype(jnp.bfloat16)                    # [tn, te]
        acc_ref[...] += jnp.dot(onehot, msg.astype(jnp.bfloat16),
                                preferred_element_type=jnp.float32)      # MXU segment-sum

    # Last edge-tile step: GIN combine + BN-folded MLP epilogue, store node tile.
    @pl.when(k == pl.num_programs(1) - 1)
    def _():
        z = (1.0 + eps_ref[0, 0]) * h_ref[...] + acc_ref[...]            # [tn, D] f32
        h1 = jnp.dot(z.astype(jnp.bfloat16), w1_ref[...],
                     preferred_element_type=jnp.float32) + c1_ref[...]
        h1 = jnp.maximum(h1, 0.0)                                        # Linear1+BN1+ReLU
        h2 = jnp.dot(h1.astype(jnp.bfloat16), w2_ref[...],
                     preferred_element_type=jnp.float32) + c2_ref[...]   # Linear2+BN_layer
        if apply_relu:                                                   # not the last layer
            h2 = jnp.maximum(h2, 0.0)
        out_ref[...] = h2


def gin_layer(h_pad, xj_pad, ee_pad, dst_row, tile_start, tile_count, max_k,
              lp, apply_relu, *, tn, te):
    """h_pad: [N_pad, D_pad] f32; xj_pad/ee_pad: [E_pad, D_pad] f32; dst_row: [1, E_pad] i32."""
    N_pad, D_pad = h_pad.shape
    E_pad = xj_pad.shape[0]
    H_pad = lp["w1"].shape[1]
    num_nt = N_pad // tn
    num_et = E_pad // te

    def edge_row_map(i, k, ts, tc):       # dst row: [1, E_pad] -> block (1, te)
        return (0, jnp.minimum(ts[i] + k, num_et - 1))

    def edge_map(i, k, ts, tc):           # xj / ee: [E_pad, D_pad] -> block (te, D_pad)
        return (jnp.minimum(ts[i] + k, num_et - 1), 0)

    def node_map(i, k, ts, tc):
        return (i, 0)

    def fixed(i, k, ts, tc):
        return (0, 0)

    flops = (2 * E_pad * tn * D_pad            # tiled one-hot segment-sum
             + 4 * N_pad * D_pad * H_pad)      # two MLP matmuls
    bytes_accessed = (4 * (2 * E_pad * D_pad + 2 * N_pad * D_pad)
                      + 2 * 2 * D_pad * H_pad + 4 * (H_pad + D_pad) + 4 * E_pad)

    grid_spec = pltpu.PrefetchScalarGridSpec(
        num_scalar_prefetch=2,
        grid=(num_nt, max_k),
        in_specs=[
            pl.BlockSpec((1, te), edge_row_map),                  # dst indices (int32)
            pl.BlockSpec((te, D_pad), edge_map),                  # x_j = h[src]
            pl.BlockSpec((te, D_pad), edge_map),                  # bond embeddings
            pl.BlockSpec((tn, D_pad), node_map),                  # h node tile
            pl.BlockSpec(memory_space=pltpu.MemorySpace.SMEM),    # eps (1,1) f32
            pl.BlockSpec((D_pad, H_pad), fixed),                  # W1' (bf16, BN-folded)
            pl.BlockSpec((1, H_pad), fixed),                      # c1  (f32)
            pl.BlockSpec((H_pad, D_pad), fixed),                  # W2' (bf16, BN-folded)
            pl.BlockSpec((1, D_pad), fixed),                      # c2  (f32)
        ],
        out_specs=pl.BlockSpec((tn, D_pad), node_map),
        scratch_shapes=[pltpu.VMEM((tn, D_pad), jnp.float32)],
    )
    kernel = functools.partial(gin_layer_kernel, tn=tn, apply_relu=apply_relu)
    return pl.pallas_call(
        kernel,
        out_shape=jax.ShapeDtypeStruct((N_pad, D_pad), jnp.float32),
        grid_spec=grid_spec,
        compiler_params=pltpu.CompilerParams(
            dimension_semantics=("parallel", "arbitrary"),
            vmem_limit_bytes=32 * 1024 * 1024),
        cost_estimate=pl.CostEstimate(flops=int(flops), transcendentals=0,
                                      bytes_accessed=int(bytes_accessed)),
    )(tile_start, tile_count, dst_row, xj_pad, ee_pad, h_pad, lp["eps"],
      lp["w1"], lp["c1"], lp["w2"], lp["c2"])


# ----------------------------------------------------------------------------
# Parameters (raw, torch-like) + offline BN folding / lane padding
# ----------------------------------------------------------------------------
def fold_bn(gamma, beta, mean, var):
    scale = gamma / jnp.sqrt(var + BN_EPS)
    shift = beta - mean * scale
    return scale, shift


def init_gnn_node_params(key, num_layer, emb_dim):
    keys = iter(jax.random.split(key, 256))
    params = {"atom_emb": [0.1 * jax.random.normal(next(keys), (d, emb_dim), jnp.float32)
                           for d in ATOM_FEATURE_DIMS]}
    H = 2 * emb_dim
    layers = []
    for _ in range(num_layer):
        lp = {}
        lp["bond_emb"] = [0.1 * jax.random.normal(next(keys), (d, emb_dim), jnp.float32)
                          for d in BOND_FEATURE_DIMS]
        lp["eps"] = jnp.zeros((1,), jnp.float32)
        lp["w1"] = jax.random.normal(next(keys), (emb_dim, H), jnp.float32) / jnp.sqrt(emb_dim)
        lp["b1"] = 0.01 * jax.random.normal(next(keys), (1, H), jnp.float32)
        lp["g1"] = 1.0 + 0.1 * jax.random.normal(next(keys), (1, H), jnp.float32)
        lp["be1"] = 0.1 * jax.random.normal(next(keys), (1, H), jnp.float32)
        lp["m1"] = 0.1 * jax.random.normal(next(keys), (1, H), jnp.float32)
        lp["v1"] = jax.random.uniform(next(keys), (1, H), jnp.float32, 0.5, 1.5)
        lp["w2"] = jax.random.normal(next(keys), (H, emb_dim), jnp.float32) / jnp.sqrt(H)
        lp["b2"] = 0.01 * jax.random.normal(next(keys), (1, emb_dim), jnp.float32)
        lp["go"] = 1.0 + 0.1 * jax.random.normal(next(keys), (1, emb_dim), jnp.float32)
        lp["bo"] = 0.1 * jax.random.normal(next(keys), (1, emb_dim), jnp.float32)
        lp["mo"] = 0.1 * jax.random.normal(next(keys), (1, emb_dim), jnp.float32)
        lp["vo"] = jax.random.uniform(next(keys), (1, emb_dim), jnp.float32, 0.5, 1.5)
        layers.append(lp)
    params["layers"] = layers
    return params


def pad_to(x, shape):
    return jnp.pad(x, [(0, s - d) for d, s in zip(x.shape, shape)])


def fold_and_pad_params(params, emb_dim):
    """Fold BN into linear weights/biases and zero-pad feature dims to multiples of 128."""
    D_pad = round_up(emb_dim, LANE)
    H_pad = round_up(2 * emb_dim, LANE)
    kp = {"atom_emb": [pad_to(t, (t.shape[0], D_pad)) for t in params["atom_emb"]],
          "layers": []}
    for lp in params["layers"]:
        s1, t1 = fold_bn(lp["g1"], lp["be1"], lp["m1"], lp["v1"])
        so, to = fold_bn(lp["go"], lp["bo"], lp["mo"], lp["vo"])
        w1f = lp["w1"] * s1                  # BN1 folded into Linear1
        c1 = lp["b1"] * s1 + t1
        w2f = lp["w2"] * so                  # per-layer BN folded into Linear2
        c2 = lp["b2"] * so + to
        kp["layers"].append({
            "bond_emb": [pad_to(t, (t.shape[0], D_pad)) for t in lp["bond_emb"]],
            "eps": lp["eps"].reshape(1, 1),
            "w1": pad_to(w1f, (D_pad, H_pad)).astype(jnp.bfloat16),
            "c1": pad_to(c1, (1, H_pad)),
            "w2": pad_to(w2f, (H_pad, D_pad)).astype(jnp.bfloat16),
            "c2": pad_to(c2, (1, D_pad)),
        })
    return kp


# ----------------------------------------------------------------------------
# Host-side graph preprocessing: sort edges by destination, build per-node-tile
# edge-tile offset/count tables (scalar-prefetch inputs).
# ----------------------------------------------------------------------------
def prepare_graph(edge_index, num_nodes, tn, te):
    src = np.asarray(edge_index[0], dtype=np.int32)
    dst = np.asarray(edge_index[1], dtype=np.int32)
    E = int(src.shape[0])
    N_pad = round_up(num_nodes, tn)
    E_pad = round_up(max(E, 1), te)

    perm = np.argsort(dst, kind="stable")
    src_s, dst_s = src[perm], dst[perm]
    pad = E_pad - E
    src_p = np.concatenate([src_s, np.zeros((pad,), np.int32)])
    # padded edges target an out-of-range node -> masked by the in-kernel one-hot
    dst_p = np.concatenate([dst_s, np.full((pad,), N_pad, np.int32)])

    num_nt = N_pad // tn
    num_et = E_pad // te
    bounds = np.arange(num_nt + 1, dtype=np.int64) * tn
    lo = np.searchsorted(dst_p, bounds[:-1], side="left")
    hi = np.searchsorted(dst_p, bounds[1:], side="left")
    t_lo = (lo // te).astype(np.int32)
    t_hi = np.where(hi > lo, (hi - 1) // te + 1, lo // te).astype(np.int32)
    count = (t_hi - t_lo).astype(np.int32)
    max_k = int(max(int(count.max()), 1)) if count.size else 1

    return {"perm": perm, "src": src_p.astype(np.int32), "dst": dst_p.astype(np.int32),
            "N_pad": N_pad, "E_pad": E_pad, "num_et": num_et,
            "tile_start": t_lo, "tile_count": count, "max_k": max_k}


# ----------------------------------------------------------------------------
# Forward pass (glue in JAX, per-layer hot path in the Pallas kernel)
# ----------------------------------------------------------------------------
def embed_sum(tables, idx):
    out = tables[0][idx[:, 0]]
    for i in range(1, len(tables)):
        out = out + tables[i][idx[:, i]]
    return out


def gnn_node_forward(kparams, x_int, edge_index, edge_attr, num_layer, emb_dim,
                     *, tn=128, te=128):
    N = int(x_int.shape[0])
    tn = min(tn, round_up(N, 8))
    assert tn % 8 == 0 and te % LANE == 0

    meta = prepare_graph(np.asarray(edge_index), N, tn, te)
    N_pad, E_pad = meta["N_pad"], meta["E_pad"]

    src_p = jnp.asarray(meta["src"])
    dst_row = jnp.asarray(meta["dst"]).reshape(1, E_pad)
    tile_start = jnp.asarray(meta["tile_start"])
    tile_count = jnp.asarray(meta["tile_count"])

    ea = np.asarray(edge_attr)[meta["perm"]]
    ea = np.concatenate([ea, np.zeros((E_pad - ea.shape[0], ea.shape[1]), ea.dtype)], axis=0)
    edge_attr_s = jnp.asarray(ea)

    h = embed_sum(kparams["atom_emb"], x_int)            # AtomEncoder (glue)  [N, D_pad]
    h = jnp.pad(h, ((0, N_pad - N), (0, 0)))
    for layer in range(num_layer):
        lp = kparams["layers"][layer]
        ee = embed_sum(lp["bond_emb"], edge_attr_s)      # BondEncoder (glue)  [E_pad, D_pad]
        xj = h[src_p]                                    # source-node gather  (glue)
        # TODO(synk): move the h[src] gather in-kernel (DMA gather on scalar-prefetched src)
        # and keep h HBM-resident across layers via input_output_aliases.
        h = gin_layer(h, xj, ee, dst_row, tile_start, tile_count, meta["max_k"],
                      lp, apply_relu=(layer != num_layer - 1), tn=tn, te=te)
        # dropout is identity in eval mode; residual=False, JK='last'
    return h[:N, :emb_dim]


# ----------------------------------------------------------------------------
# Pure-JAX reference (eval mode) for a correctness sanity check
# ----------------------------------------------------------------------------
def reference_forward(params, x_int, edge_index, edge_attr, num_layer):
    src, dst = edge_index[0], edge_index[1]
    h = embed_sum(params["atom_emb"], x_int)
    for layer in range(num_layer):
        lp = params["layers"][layer]
        ee = embed_sum(lp["bond_emb"], edge_attr)
        msg = jnp.maximum(h[src] + ee, 0.0)
        agg = jnp.zeros_like(h).at[dst].add(msg)
        z = (1.0 + lp["eps"][0]) * h + agg
        s1, t1 = fold_bn(lp["g1"], lp["be1"], lp["m1"], lp["v1"])
        so, to = fold_bn(lp["go"], lp["bo"], lp["mo"], lp["vo"])
        h1 = jnp.maximum((z @ lp["w1"] + lp["b1"]) * s1 + t1, 0.0)
        h2 = (h1 @ lp["w2"] + lp["b2"]) * so + to
        if layer != num_layer - 1:
            h2 = jnp.maximum(h2, 0.0)
        h = h2
    return h


# ----------------------------------------------------------------------------
if __name__ == "__main__":
    num_layer = 2
    emb_dim = 32
    N, E = 64, 256

    key = jax.random.PRNGKey(0)
    k_par, k_x, k_ei, k_ea = jax.random.split(key, 4)

    raw_params = init_gnn_node_params(k_par, num_layer, emb_dim)
    kparams = fold_and_pad_params(raw_params, emb_dim)

    # Synthetic OGB-molhiv-style graph batch.
    x_int = jnp.stack(
        [jax.random.randint(jax.random.fold_in(k_x, i), (N,), 0, d)
         for i, d in enumerate(ATOM_FEATURE_DIMS)], axis=1).astype(jnp.int32)      # [N, 9]
    edge_index = jax.random.randint(k_ei, (2, E), 0, N).astype(jnp.int32)          # [2, E]
    edge_attr = jnp.stack(
        [jax.random.randint(jax.random.fold_in(k_ea, i), (E,), 0, d)
         for i, d in enumerate(BOND_FEATURE_DIMS)], axis=1).astype(jnp.int32)      # [E, 3]

    node_repr = gnn_node_forward(kparams, x_int, edge_index, edge_attr,
                                 num_layer, emb_dim, tn=16, te=128)
    node_repr = jax.block_until_ready(node_repr)
    assert node_repr.shape == (N, emb_dim) and node_repr.dtype == jnp.float32

    ref = jax.block_until_ready(
        reference_forward(raw_params, x_int, edge_index, edge_attr, num_layer))
    max_err = float(jnp.max(jnp.abs(node_repr - ref)))
    scale = float(jnp.max(jnp.abs(ref))) + 1e-6
    assert max_err <= 0.05 * scale + 0.05, f"kernel/reference mismatch: {max_err} (scale {scale})"

    print("KERNEL_OK")
</pallas_src>

<mosaic_0001>
module attributes {stable_mosaic.version = 11 : i64} {
  func.func @gin_layer_kernel(%arg0: i32, %arg1: i32, %arg2: memref<4xi32, #tpu.memory_space<smem>>, %arg3: memref<4xi32, #tpu.memory_space<smem>>, %arg4: memref<1x128xi32, #tpu.memory_space<vmem>>, %arg5: memref<128x128xf32, #tpu.memory_space<vmem>>, %arg6: memref<128x128xf32, #tpu.memory_space<vmem>>, %arg7: memref<16x128xf32, #tpu.memory_space<vmem>>, %arg8: memref<1x1xf32, #tpu.memory_space<smem>>, %arg9: memref<128x128xbf16, #tpu.memory_space<vmem>>, %arg10: memref<1x128xf32, #tpu.memory_space<vmem>>, %arg11: memref<128x128xbf16, #tpu.memory_space<vmem>>, %arg12: memref<1x128xf32, #tpu.memory_space<vmem>>, %arg13: memref<16x128xf32, #tpu.memory_space<vmem>>, %arg14: memref<16x128xf32, #tpu.memory_space<vmem>>) attributes {dimension_semantics = [#tpu.dimension_semantics<parallel>, #tpu.dimension_semantics<arbitrary>], iteration_bounds = array<i64: 4, 2>, scalar_prefetch = 2 : i64, scratch_operands = 1 : i64, tpu.core_type = #tpu.core_type<tc>, window_params = [{transform_indices = @transform_0, window_bounds = array<i64: 1, 128>}, {transform_indices = @transform_1, window_bounds = array<i64: 128, 128>}, {transform_indices = @transform_2, window_bounds = array<i64: 128, 128>}, {transform_indices = @transform_3, window_bounds = array<i64: 16, 128>}, {transform_indices = @transform_4, window_bounds = array<i64: 1, 1>}, {pipeline_mode = #tpu.pipeline_mode<synchronous>, transform_indices = @transform_5, window_bounds = array<i64: 128, 128>}, {pipeline_mode = #tpu.pipeline_mode<synchronous>, transform_indices = @transform_6, window_bounds = array<i64: 1, 128>}, {pipeline_mode = #tpu.pipeline_mode<synchronous>, transform_indices = @transform_7, window_bounds = array<i64: 128, 128>}, {pipeline_mode = #tpu.pipeline_mode<synchronous>, transform_indices = @transform_8, window_bounds = array<i64: 1, 128>}, {transform_indices = @transform_9, window_bounds = array<i64: 16, 128>}]} {
    %c0_i32 = arith.constant 0 : i32
    %0 = arith.cmpi eq, %arg1, %c0_i32 : i32
    %1 = arith.extui %0 : i1 to i32
    %c0_i32_0 = arith.constant 0 : i32
    %2 = arith.cmpi ne, %1, %c0_i32_0 : i32
    scf.if %2 {
      %cst = arith.constant 0.000000e+00 : f32
      %11 = vector.broadcast %cst : f32 to vector<16x128xf32>
      %c0 = arith.constant 0 : index
      %c0_3 = arith.constant 0 : index
      %12 = vector.load %arg14[%c0, %c0_3] : memref<16x128xf32, #tpu.memory_space<vmem>>, vector<16x128xf32>
      tpu.vector_store %arg14[%c0, %c0_3], %11 {strides = array<i32>} : memref<16x128xf32, #tpu.memory_space<vmem>>, vector<16x128xf32>,
    } else {
    }
    %3 = arith.index_cast %arg0 : i32 to index
    %4 = memref.load %arg3[%3] : memref<4xi32, #tpu.memory_space<smem>>
    %5 = arith.cmpi slt, %arg1, %4 : i32
    %6 = arith.extui %5 : i1 to i32
    %c0_i32_1 = arith.constant 0 : i32
    %7 = arith.cmpi ne, %6, %c0_i32_1 : i32
    scf.if %7 {
      %c0 = arith.constant 0 : index
      %c0_3 = arith.constant 0 : index
      %11 = vector.load %arg5[%c0, %c0_3] : memref<128x128xf32, #tpu.memory_space<vmem>>, vector<128x128xf32>
      %c0_4 = arith.constant 0 : index
      %c0_5 = arith.constant 0 : index
      %12 = vector.load %arg6[%c0_4, %c0_5] : memref<128x128xf32, #tpu.memory_space<vmem>>, vector<128x128xf32>
      %13 = arith.addf %11, %12 : vector<128x128xf32>
      %cst = arith.constant 0.000000e+00 : f32
      %14 = vector.broadcast %cst : f32 to vector<128x128xf32>
      %15 = arith.maximumf %13, %14 : vector<128x128xf32>
      %c0_6 = arith.constant 0 : index
      %c0_7 = arith.constant 0 : index
      %16 = vector.load %arg4[%c0_6, %c0_7] : memref<1x128xi32, #tpu.memory_space<vmem>>, vector<1x128xi32>
      %c16_i32 = arith.constant 16 : i32
      %17 = arith.muli %arg0, %c16_i32 : i32
      %18 = vector.broadcast %17 : i32 to vector<1x128xi32>
      %19 = arith.subi %16, %18 : vector<1x128xi32>
      %20 = tpu.iota {dimensions = array<i32: 0>} : vector<16x128xi32>
      %21 = vector.broadcast %19 : vector<1x128xi32> to vector<16x128xi32>
      %22 = arith.cmpi eq, %20, %21 : vector<16x128xi32>
      %23 = arith.extui %22 : vector<16x128xi1> to vector<16x128xi32>
      %24 = arith.sitofp %23 : vector<16x128xi32> to vector<16x128xf32>
      %25 = arith.truncf %24 : vector<16x128xf32> to vector<16x128xbf16>
      %c0_8 = arith.constant 0 : index
      %c0_9 = arith.constant 0 : index
      %26 = vector.load %arg14[%c0_8, %c0_9] : memref<16x128xf32, #tpu.memory_space<vmem>>, vector<16x128xf32>
      %27 = arith.truncf %15 : vector<128x128xf32> to vector<128x128xbf16>
      %cst_10 = arith.constant dense<0.000000e+00> : vector<16x128xf32>
      %28 = tpu.matmul %25, %27, %cst_10 {dimension_numbers = #tpu.dot_dimension_numbers<[1], [0], [0], [1], [0, 0, 1, 1], [], []>} : vector<16x128xbf16>, vector<128x128xbf16>, vector<16x128xf32> -> vector<16x128xf32>
      %29 = arith.addf %26, %28 : vector<16x128xf32>
      %c0_11 = arith.constant 0 : index
      %c0_12 = arith.constant 0 : index
      %30 = vector.load %arg14[%c0_11, %c0_12] : memref<16x128xf32, #tpu.memory_space<vmem>>, vector<16x128xf32>
      tpu.vector_store %arg14[%c0_11, %c0_12], %29 {strides = array<i32>} : memref<16x128xf32, #tpu.memory_space<vmem>>, vector<16x128xf32>,
    } else {
    }
    %c1_i32 = arith.constant 1 : i32
    %8 = arith.cmpi eq, %arg1, %c1_i32 : i32
    %9 = arith.extui %8 : i1 to i32
    %c0_i32_2 = arith.constant 0 : i32
    %10 = arith.cmpi ne, %9, %c0_i32_2 : i32
    scf.if %10 {
      %c0 = arith.constant 0 : index
      %c0_3 = arith.constant 0 : index
      %11 = memref.load %arg8[%c0, %c0_3] : memref<1x1xf32, #tpu.memory_space<smem>>
      %cst = arith.constant 1.000000e+00 : f32
      %12 = arith.addf %cst, %11 : f32
      %c0_4 = arith.constant 0 : index
      %c0_5 = arith.constant 0 : index
      %13 = vector.load %arg7[%c0_4, %c0_5] : memref<16x128xf32, #tpu.memory_space<vmem>>, vector<16x128xf32>
      %14 = vector.broadcast %12 : f32 to vector<16x128xf32>
      %15 = arith.mulf %14, %13 : vector<16x128xf32>
      %c0_6 = arith.constant 0 : index
      %c0_7 = arith.constant 0 : index
      %16 = vector.load %arg14[%c0_6, %c0_7] : memref<16x128xf32, #tpu.memory_space<vmem>>, vector<16x128xf32>
      %17 = arith.addf %15, %16 : vector<16x128xf32>
      %18 = arith.truncf %17 : vector<16x128xf32> to vector<16x128xbf16>
      %c0_8 = arith.constant 0 : index
      %c0_9 = arith.constant 0 : index
      %19 = vector.load %arg9[%c0_8, %c0_9] : memref<128x128xbf16, #tpu.memory_space<vmem>>, vector<128x128xbf16>
      %cst_10 = arith.constant dense<0.000000e+00> : vector<16x128xf32>
      %20 = tpu.matmul %18, %19, %cst_10 {dimension_numbers = #tpu.dot_dimension_numbers<[1], [0], [0], [1], [0, 0, 1, 1], [], []>} : vector<16x128xbf16>, vector<128x128xbf16>, vector<16x128xf32> -> vector<16x128xf32>
      %c0_11 = arith.constant 0 : index
      %c0_12 = arith.constant 0 : index
      %21 = vector.load %arg10[%c0_11, %c0_12] : memref<1x128xf32, #tpu.memory_space<vmem>>, vector<1x128xf32>
      %22 = vector.broadcast %21 : vector<1x128xf32> to vector<16x128xf32>
      %23 = arith.addf %20, %22 : vector<16x128xf32>
      %cst_13 = arith.constant 0.000000e+00 : f32
      %24 = vector.broadcast %cst_13 : f32 to vector<16x128xf32>
      %25 = arith.maximumf %23, %24 : vector<16x128xf32>
      %26 = arith.truncf %25 : vector<16x128xf32> to vector<16x128xbf16>
      %c0_14 = arith.constant 0 : index
      %c0_15 = arith.constant 0 : index
      %27 = vector.load %arg11[%c0_14, %c0_15] : memref<128x128xbf16, #tpu.memory_space<vmem>>, vector<128x128xbf16>
      %cst_16 = arith.constant dense<0.000000e+00> : vector<16x128xf32>
      %28 = tpu.matmul %26, %27, %cst_16 {dimension_numbers = #tpu.dot_dimension_numbers<[1], [0], [0], [1], [0, 0, 1, 1], [], []>} : vector<16x128xbf16>, vector<128x128xbf16>, vector<16x128xf32> -> vector<16x128xf32>
      %c0_17 = arith.constant 0 : index
      %c0_18 = arith.constant 0 : index
      %29 = vector.load %arg12[%c0_17, %c0_18] : memref<1x128xf32, #tpu.memory_space<vmem>>, vector<1x128xf32>
      %30 = vector.broadcast %29 : vector<1x128xf32> to vector<16x128xf32>
      %31 = arith.addf %28, %30 : vector<16x128xf32>
      %cst_19 = arith.constant 0.000000e+00 : f32
      %32 = vector.broadcast %cst_19 : f32 to vector<16x128xf32>
      %33 = arith.maximumf %31, %32 : vector<16x128xf32>
      %c0_20 = arith.constant 0 : index
      %c0_21 = arith.constant 0 : index
      %34 = vector.load %arg13[%c0_20, %c0_21] : memref<16x128xf32, #tpu.memory_space<vmem>>, vector<16x128xf32>
      tpu.vector_store %arg13[%c0_20, %c0_21], %33 {strides = array<i32>} : memref<16x128xf32, #tpu.memory_space<vmem>>, vector<16x128xf32>,
    } else {
    }
    return
  }
  func.func @transform_0(%arg0: i32, %arg1: i32, %arg2: memref<4xi32, #tpu.memory_space<smem>>, %arg3: memref<4xi32, #tpu.memory_space<smem>>) -> (i32, i32) {
    %0 = arith.index_cast %arg0 : i32 to index
    %1 = memref.load %arg2[%0] : memref<4xi32, #tpu.memory_space<smem>>
    %2 = arith.addi %1, %arg1 : i32
    %c1_i32 = arith.constant 1 : i32
    %3 = arith.minsi %2, %c1_i32 : i32
    %c0_i32 = arith.constant 0 : i32
    %c0_i32_0 = arith.constant 0 : i32
    return %c0_i32, %3 : i32, i32
  }
  func.func @transform_1(%arg0: i32, %arg1: i32, %arg2: memref<4xi32, #tpu.memory_space<smem>>, %arg3: memref<4xi32, #tpu.memory_space<smem>>) -> (i32, i32) {
    %0 = arith.index_cast %arg0 : i32 to index
    %1 = memref.load %arg2[%0] : memref<4xi32, #tpu.memory_space<smem>>
    %2 = arith.addi %1, %arg1 : i32
    %c1_i32 = arith.constant 1 : i32
    %3 = arith.minsi %2, %c1_i32 : i32
    %c0_i32 = arith.constant 0 : i32
    %c0_i32_0 = arith.constant 0 : i32
    return %3, %c0_i32 : i32, i32
  }
  func.func @transform_2(%arg0: i32, %arg1: i32, %arg2: memref<4xi32, #tpu.memory_space<smem>>, %arg3: memref<4xi32, #tpu.memory_space<smem>>) -> (i32, i32) {
    %0 = arith.index_cast %arg0 : i32 to index
    %1 = memref.load %arg2[%0] : memref<4xi32, #tpu.memory_space<smem>>
    %2 = arith.addi %1, %arg1 : i32
    %c1_i32 = arith.constant 1 : i32
    %3 = arith.minsi %2, %c1_i32 : i32
    %c0_i32 = arith.constant 0 : i32
    %c0_i32_0 = arith.constant 0 : i32
    return %3, %c0_i32 : i32, i32
  }
  func.func @transform_3(%arg0: i32, %arg1: i32, %arg2: memref<4xi32, #tpu.memory_space<smem>>, %arg3: memref<4xi32, #tpu.memory_space<smem>>) -> (i32, i32) {
    %c0_i32 = arith.constant 0 : i32
    %c0_i32_0 = arith.constant 0 : i32
    return %arg0, %c0_i32 : i32, i32
  }
  func.func @transform_4(%arg0: i32, %arg1: i32, %arg2: memref<4xi32, #tpu.memory_space<smem>>, %arg3: memref<4xi32, #tpu.memory_space<smem>>) -> (i32, i32) {
    %c0_i32 = arith.constant 0 : i32
    %c0_i32_0 = arith.constant 0 : i32
    %c0_i32_1 = arith.constant 0 : i32
    return %c0_i32, %c0_i32_0 : i32, i32
  }
  func.func @transform_5(%arg0: i32, %arg1: i32, %arg2: memref<4xi32, #tpu.memory_space<smem>>, %arg3: memref<4xi32, #tpu.memory_space<smem>>) -> (i32, i32) {
    %c0_i32 = arith.constant 0 : i32
    %c0_i32_0 = arith.constant 0 : i32
    %c0_i32_1 = arith.constant 0 : i32
    return %c0_i32, %c0_i32_0 : i32, i32
  }
  func.func @transform_6(%arg0: i32, %arg1: i32, %arg2: memref<4xi32, #tpu.memory_space<smem>>, %arg3: memref<4xi32, #tpu.memory_space<smem>>) -> (i32, i32) {
    %c0_i32 = arith.constant 0 : i32
    %c0_i32_0 = arith.constant 0 : i32
    %c0_i32_1 = arith.constant 0 : i32
    return %c0_i32, %c0_i32_0 : i32, i32
  }
  func.func @transform_7(%arg0: i32, %arg1: i32, %arg2: memref<4xi32, #tpu.memory_space<smem>>, %arg3: memref<4xi32, #tpu.memory_space<smem>>) -> (i32, i32) {
    %c0_i32 = arith.constant 0 : i32
    %c0_i32_0 = arith.constant 0 : i32
    %c0_i32_1 = arith.constant 0 : i32
    return %c0_i32, %c0_i32_0 : i32, i32
  }
  func.func @transform_8(%arg0: i32, %arg1: i32, %arg2: memref<4xi32, #tpu.memory_space<smem>>, %arg3: memref<4xi32, #tpu.memory_space<smem>>) -> (i32, i32) {
    %c0_i32 = arith.constant 0 : i32
    %c0_i32_0 = arith.constant 0 : i32
    %c0_i32_1 = arith.constant 0 : i32
    return %c0_i32, %c0_i32_0 : i32, i32
  }
  func.func @transform_9(%arg0: i32, %arg1: i32, %arg2: memref<4xi32, #tpu.memory_space<smem>>, %arg3: memref<4xi32, #tpu.memory_space<smem>>) -> (i32, i32) {
    %c0_i32 = arith.constant 0 : i32
    %c0_i32_0 = arith.constant 0 : i32
    return %arg0, %c0_i32 : i32, i32
  }
}

</mosaic_0001>

<llo_original>
// kernel: tpu_custom_call.1
$region0: #{tpu_custom_call.1}
  #allocation0 [shape = 'u32[]', space=smem, size = 0x4, offset = 0x4, fixed_abs, tag = 'smem constant byte address 0x4 - core index']
  #allocation1 [shape = 'u32[144,128]{1,0:T(1,128)}', space=vmem, size = 0x12000, scoped, tag = 'internal scratch']
  #allocation2 [shape = 'f32[16,128]{1,0:T(8,128)}', space=vmem, size = 0x2000, scoped, tag = 'scratch operand']
  #allocation3 [shape = 's32[1]{0}', space=sflag, size = 0x4, scoped, tag = 'scoped memory for tpu_custom_call.1']
  #allocation4 [shape = 'u8[512]{0}', space=smem, size = 0x200, scoped, tag = 'prefetched SMEM operand 0']
  #allocation5 [shape = 'u8[512]{0}', space=smem, size = 0x200, scoped, tag = 'prefetched SMEM operand 1']
  #allocation6 [shape = 'f32[1,1]{1,0:T(1,128)S(6)}', space=smem, size = 0x200, scoped, tag = 'scoped memory for tpu_custom_call.1']
  %s0 = inlined_call_operand.vmem [shape: s32[4], index: 0, kind: input, shape index: {}]
  %s1 = inlined_call_operand.hbm [shape: s32[4], index: 1, kind: input, shape index: {}]
  %s2 = inlined_call_operand.vmem [shape: s32[1,256], index: 2, kind: input, shape index: {}]
  %s3 = inlined_call_operand.hbm [shape: f32[256,128], index: 3, kind: input, shape index: {}]
  %s4 = inlined_call_operand.hbm [shape: f32[256,128], index: 4, kind: input, shape index: {}]
  %s5 = inlined_call_operand.hbm [shape: f32[64,128], index: 5, kind: input, shape index: {}]
  %s6 = inlined_call_operand.<no memory space> [shape: f32[1,1], index: 6, kind: input, shape index: {}]
  %s7 = inlined_call_operand.hbm [shape: bf16[128,128], index: 7, kind: input, shape index: {}]
  %s8 = inlined_call_operand.vmem [shape: f32[1,128], index: 8, kind: input, shape index: {}]
  %s9 = inlined_call_operand.hbm [shape: bf16[128,128], index: 9, kind: input, shape index: {}]
  %s10 = inlined_call_operand.vmem [shape: f32[1,128], index: 10, kind: input, shape index: {}]
  %s11 = inlined_call_operand.hbm [shape: f32[64,128], index: 11, kind: output, shape index: {}]
  %s12 = sld [smem:[#allocation0]]
  $region101: #{tpu_custom_call.1} parent=0
    _
  %s14 = ssub.s32 1, %s12
  %s15 = scalar_select 0, %s14, %s12
  %s16 = sshll.u32 %s0, 4
  %s17 = int_to_ptr.vmem [resolvable:$true] %s16
  %19 = dma.vmem_to_smem %s17, 16, [#allocation4], [#allocation3]
  %21 = dma.hbm_to_smem %s1, 16, [#allocation5], [#allocation3]
  %22 = sst [smem:[#allocation6]] %s6
  %23 = dma.done [#allocation3], 32
  %24 = sfence
  $region1: #{tpu_custom_call.1} parent=0
    #allocation7 [shape = 'u8[131072]{0}', space=vmem, size = 0x20000, scoped, tag = 'input window, operand 3']
    #allocation8 [shape = 's32[2]{0}', space=sflag, size = 0x8, scoped, tag = 'scoped memory for tpu_custom_call.1']
    #allocation9 [shape = 's32[2]{0}', space=sflag, size = 0x8, scoped, tag = 'scoped memory for tpu_custom_call.1']
    #allocation10 [shape = 'u8[131072]{0}', space=vmem, size = 0x20000, scoped, tag = 'input window, operand 4']
    #allocation11 [shape = 's32[2]{0}', space=sflag, size = 0x8, scoped, tag = 'scoped memory for tpu_custom_call.1']
    #allocation12 [shape = 'u8[16384]{0}', space=vmem, size = 0x4000, scoped, tag = 'input window, operand 5']
    #allocation13 [shape = 'u8[32768]{0}', space=vmem, size = 0x8000, scoped, tag = 'input window, operand 7, single buffered']
    #allocation14 [shape = 's32[1]{0}', space=sflag, size = 0x4, scoped, tag = 'scoped memory for tpu_custom_call.1']
    #allocation15 [shape = 'u8[32768]{0}', space=vmem, size = 0x8000, scoped, tag = 'input window, operand 9, single buffered']
    #allocation16 [shape = 'u8[16384]{0}', space=vmem, size = 0x4000, scoped, tag = 'output window, operand 0']
    %25 = vsyncpa [#allocation8], 0
    %s26 = scalar_lea.sflag [#allocation8], 1
    %27 = vsyncpa %s26, 0
    %28 = vsyncpa [#allocation11], 0
    %s29 = scalar_lea.sflag [#allocation11], 1
    %30 = vsyncpa %s29, 0
    %31 = vsyncpa [#allocation14], 0
    %32 = vsyncpa [#allocation9], 0
    %s33 = scalar_lea.sflag [#allocation9], 1
    %34 = vsyncpa %s33, 0
    loop: start=0, step=1, limit=10
    $region2: #{tpu_custom_call.1} parent=1 // loop_pre_header
      _
    $region3: #{tpu_custom_call.1} parent=1 // loop_header
      %s36 = sphi 0, %s40
      %p37 = scmp.ge.s32.totalorder %s36, 10
      %s43 = sphi 0, %s55
      %s44 = sphi 0, %s51
      %s45 = sphi 0, %s43
      %s46 = sphi 0, %s44
      %s47 = sphi 0, %s45
      %s48 = sphi 0, %s46
      %s66 = sphi 0, %s68
      %s69 = sphi 0, %s66
      %s70 = sphi 0, %s69
      %s86 = sphi 0, %s70
      %s100 = sphi 0, %s102
      %s103 = sphi 0, %s100
      %s104 = sphi 0, %s103
      %s120 = sphi 0, %s104
      %s134 = sphi 0, %s136
      %s137 = sphi 0, %s134
      %s138 = sphi 0, %s137
      %s154 = sphi 0, %s138
      %s160 = sphi 0, %s162
      %s163 = sphi 0, %s160
      %s164 = sphi 0, %s163
      %s180 = sphi 0, %s164
      %s184 = sphi 0, %s184
      %s186 = sphi 0, %s184
      %s187 = sphi 0, %s186
      %s201 = sphi 0, %s187
      %s205 = sphi 0, %s205
      %s207 = sphi 0, %s205
      %s208 = sphi 0, %s207
      %s222 = sphi 0, %s208
      %s226 = sphi 0, %s226
      %s228 = sphi 0, %s226
      %s229 = sphi 0, %s228
      %s243 = sphi 0, %s229
      %s247 = sphi 0, %s247
      %s249 = sphi 0, %s247
      %s250 = sphi 0, %s249
      %s264 = sphi 0, %s250
      %s268 = sphi 0, %s268
      %s270 = sphi 0, %s268
      %s271 = sphi 0, %s270
      %s285 = sphi 0, %s271
      %s291 = sphi 0, %s293
      %s294 = sphi 0, %s291
      %s295 = sphi 0, %s294
      %s311 = sphi 0, %s295
    $region4: #{tpu_custom_call.1} parent=1 // loop_header_branch
      %39 = sbr.rel (%p37) target = $region8
    $region5: #{tpu_custom_call.1} parent=1 // loop_body
      %s41 = ssub.s32 %s36, 1
      %s42 = ssub.s32 %s36, 2
      %s49 = sadd.s32 1, %s44
      %p50 = scmp.ge.s32.totalorder %s49, 2
      %s51 = scalar_select %p50, 0, %s49
      %s52 = sadd.s32 1, %s43
      %s53 = scalar_select %p50, %s52, %s43
      %p54 = scmp.ge.s32.totalorder %s53, 4
      %s55 = scalar_select %p54, 0, %s53
      %s56 = sld [smem:[#allocation4 + %s43]]
      %s57 = sadd.s32 %s56, %s44
      %p58 = scmp.lt.s32.totalorder %s57, 1
      %s59 = scalar_select %p58, %s57, 1
      %s60 = sld [smem:[#allocation4 + %s55]]
      %s61 = sadd.s32 %s60, %s51
      %p62 = scmp.lt.s32.totalorder %s61, 1
      %s63 = scalar_select %p62, %s61, 1
      %s64 = ssub.s32 %s59, %s63
      %p65 = scmp.eq.s32.totalorder %s64, 0
      %s67 = sadd.s32 %s66, 1
      %s68 = scalar_select %p65, %s66, %s67
      %p71 = pneg %p65
      %p72 = scmp.eq.s32.totalorder %s36, 7
      %p73 = por %p71, %p72
      %p74 = scmp.ne.s32.totalorder %s66, %s69
      %p75 = scmp.eq.s32.totalorder %s36, 0
      %p76 = por %p74, %p75
      %p77 = scmp.ne.s32.totalorder %s66, %s69
      %p78 = scmp.eq.s32.totalorder %s41, 7
      %p79 = por %p77, %p78
      %p80 = scmp.ne.s32.totalorder %s69, %s70
      %p81 = scmp.eq.s32.totalorder %s41, 0
      %p82 = por %p80, %p81
      %p83 = scmp.ne.s32.totalorder %s69, %s70
      %p84 = scmp.eq.s32.totalorder %s42, 7
      %p85 = por %p83, %p84
      %p87 = scmp.ne.s32.totalorder %s70, %s86
      %p88 = scmp.eq.s32.totalorder %s42, 0
      %p89 = por %p87, %p88
      %s90 = sld [smem:[#allocation4 + %s43]]
      %s91 = sadd.s32 %s90, %s44
      %p92 = scmp.lt.s32.totalorder %s91, 1
      %s93 = scalar_select %p92, %s91, 1
      %s94 = sld [smem:[#allocation4 + %s55]]
      %s95 = sadd.s32 %s94, %s51
      %p96 = scmp.lt.s32.totalorder %s95, 1
      %s97 = scalar_select %p96, %s95, 1
      %s98 = ssub.s32 %s93, %s97
      %p99 = scmp.eq.s32.totalorder %s98, 0
      %s101 = sadd.s32 %s100, 1
      %s102 = scalar_select %p99, %s100, %s101
      %p105 = pneg %p99
      %p106 = scmp.eq.s32.totalorder %s36, 7
      %p107 = por %p105, %p106
      %p108 = scmp.ne.s32.totalorder %s100, %s103
      %p109 = scmp.eq.s32.totalorder %s36, 0
      %p110 = por %p108, %p109
      %p111 = scmp.ne.s32.totalorder %s100, %s103
      %p112 = scmp.eq.s32.totalorder %s41, 7
      %p113 = por %p111, %p112
      %p114 = scmp.ne.s32.totalorder %s103, %s104
      %p115 = scmp.eq.s32.totalorder %s41, 0
      %p116 = por %p114, %p115
      %p117 = scmp.ne.s32.totalorder %s103, %s104
      %p118 = scmp.eq.s32.totalorder %s42, 7
      %p119 = por %p117, %p118
      %p121 = scmp.ne.s32.totalorder %s104, %s120
      %p122 = scmp.eq.s32.totalorder %s42, 0
      %p123 = por %p121, %p122
      %s124 = sld [smem:[#allocation4 + %s43]]
      %s125 = sadd.s32 %s124, %s44
      %p126 = scmp.lt.s32.totalorder %s125, 1
      %s127 = scalar_select %p126, %s125, 1
      %s128 = sld [smem:[#allocation4 + %s55]]
      %s129 = sadd.s32 %s128, %s51
      %p130 = scmp.lt.s32.totalorder %s129, 1
      %s131 = scalar_select %p130, %s129, 1
      %s132 = ssub.s32 %s127, %s131
      %p133 = scmp.eq.s32.totalorder %s132, 0
      %s135 = sadd.s32 %s134, 1
      %s136 = scalar_select %p133, %s134, %s135
      %p139 = pneg %p133
      %p140 = scmp.eq.s32.totalorder %s36, 7
      %p141 = por %p139, %p140
      %p142 = scmp.ne.s32.totalorder %s134, %s137
      %p143 = scmp.eq.s32.totalorder %s36, 0
      %p144 = por %p142, %p143
      %p145 = scmp.ne.s32.totalorder %s134, %s137
      %p146 = scmp.eq.s32.totalorder %s41, 7
      %p147 = por %p145, %p146
      %p148 = scmp.ne.s32.totalorder %s137, %s138
      %p149 = scmp.eq.s32.totalorder %s41, 0
      %p150 = por %p148, %p149
      %p151 = scmp.ne.s32.totalorder %s137, %s138
      %p152 = scmp.eq.s32.totalorder %s42, 7
      %p153 = por %p151, %p152
      %p155 = scmp.ne.s32.totalorder %s138, %s154
      %p156 = scmp.eq.s32.totalorder %s42, 0
      %p157 = por %p155, %p156
      %s158 = ssub.s32 %s43, %s55
      %p159 = scmp.eq.s32.totalorder %s158, 0
      %s161 = sadd.s32 %s160, 1
      %s162 = scalar_select %p159, %s160, %s161
      %p165 = pneg %p159
      %p166 = scmp.eq.s32.totalorder %s36, 7
      %p167 = por %p165, %p166
      %p168 = scmp.ne.s32.totalorder %s160, %s163
      %p169 = scmp.eq.s32.totalorder %s36, 0
      %p170 = por %p168, %p169
      %p171 = scmp.ne.s32.totalorder %s160, %s163
      %p172 = scmp.eq.s32.totalorder %s41, 7
      %p173 = por %p171, %p172
      %p174 = scmp.ne.s32.totalorder %s163, %s164
      %p175 = scmp.eq.s32.totalorder %s41, 0
      %p176 = por %p174, %p175
      %p177 = scmp.ne.s32.totalorder %s163, %s164
      %p178 = scmp.eq.s32.totalorder %s42, 7
      %p179 = por %p177, %p178
      %p181 = scmp.ne.s32.totalorder %s164, %s180
      %p182 = scmp.eq.s32.totalorder %s42, 0
      %p183 = por %p181, %p182
      %s185 = sadd.s32 %s184, 1
      %p188 = scmp.eq.s32.totalorder %s36, 7
      %p189 = scmp.ne.s32.totalorder %s184, %s186
      %p190 = scmp.eq.s32.totalorder %s36, 0
      %p191 = por %p189, %p190
      %p192 = scmp.ne.s32.totalorder %s184, %s186
      %p193 = scmp.eq.s32.totalorder %s41, 7
      %p194 = por %p192, %p193
      %p195 = scmp.ne.s32.totalorder %s186, %s187
      %p196 = scmp.eq.s32.totalorder %s41, 0
      %p197 = por %p195, %p196
      %p198 = scmp.ne.s32.totalorder %s186, %s187
      %p199 = scmp.eq.s32.totalorder %s42, 7
      %p200 = por %p198, %p199
      %p202 = scmp.ne.s32.totalorder %s187, %s201
      %p203 = scmp.eq.s32.totalorder %s42, 0
      %p204 = por %p202, %p203
      %s206 = sadd.s32 %s205, 1
      %p209 = scmp.eq.s32.totalorder %s36, 7
      %p210 = scmp.ne.s32.totalorder %s205, %s207
      %p211 = scmp.eq.s32.totalorder %s36, 0
      %p212 = por %p210, %p211
      %p213 = scmp.ne.s32.totalorder %s205, %s207
      %p214 = scmp.eq.s32.totalorder %s41, 7
      %p215 = por %p213, %p214
      %p216 = scmp.ne.s32.totalorder %s207, %s208
      %p217 = scmp.eq.s32.totalorder %s41, 0
      %p218 = por %p216, %p217
      %p219 = scmp.ne.s32.totalorder %s207, %s208
      %p220 = scmp.eq.s32.totalorder %s42, 7
      %p221 = por %p219, %p220
      %p223 = scmp.ne.s32.totalorder %s208, %s222
      %p224 = scmp.eq.s32.totalorder %s42, 0
      %p225 = por %p223, %p224
      %s227 = sadd.s32 %s226, 1
      %p230 = scmp.eq.s32.totalorder %s36, 7
      %p231 = scmp.ne.s32.totalorder %s226, %s228
      %p232 = scmp.eq.s32.totalorder %s36, 0
      %p233 = por %p231, %p232
      %p234 = scmp.ne.s32.totalorder %s226, %s228
      %p235 = scmp.eq.s32.totalorder %s41, 7
      %p236 = por %p234, %p235
      %p237 = scmp.ne.s32.totalorder %s228, %s229
      %p238 = scmp.eq.s32.totalorder %s41, 0
      %p239 = por %p237, %p238
      %p240 = scmp.ne.s32.totalorder %s228, %s229
      %p241 = scmp.eq.s32.totalorder %s42, 7
      %p242 = por %p240, %p241
      %p244 = scmp.ne.s32.totalorder %s229, %s243
      %p245 = scmp.eq.s32.totalorder %s42, 0
      %p246 = por %p244, %p245
      %s248 = sadd.s32 %s247, 1
      %p251 = scmp.eq.s32.totalorder %s36, 7
      %p252 = scmp.ne.s32.totalorder %s247, %s249
      %p253 = scmp.eq.s32.totalorder %s36, 0
      %p254 = por %p252, %p253
      %p255 = scmp.ne.s32.totalorder %s247, %s249
      %p256 = scmp.eq.s32.totalorder %s41, 7
      %p257 = por %p255, %p256
      %p258 = scmp.ne.s32.totalorder %s249, %s250
      %p259 = scmp.eq.s32.totalorder %s41, 0
      %p260 = por %p258, %p259
      %p261 = scmp.ne.s32.totalorder %s249, %s250
      %p262 = scmp.eq.s32.totalorder %s42, 7
      %p263 = por %p261, %p262
      %p265 = scmp.ne.s32.totalorder %s250, %s264
      %p266 = scmp.eq.s32.totalorder %s42, 0
      %p267 = por %p265, %p266
      %s269 = sadd.s32 %s268, 1
      %p272 = scmp.eq.s32.totalorder %s36, 7
      %p273 = scmp.ne.s32.totalorder %s268, %s270
      %p274 = scmp.eq.s32.totalorder %s36, 0
      %p275 = por %p273, %p274
      %p276 = scmp.ne.s32.totalorder %s268, %s270
      %p277 = scmp.eq.s32.totalorder %s41, 7
      %p278 = por %p276, %p277
      %p279 = scmp.ne.s32.totalorder %s270, %s271
      %p280 = scmp.eq.s32.totalorder %s41, 0
      %p281 = por %p279, %p280
      %p282 = scmp.ne.s32.totalorder %s270, %s271
      %p283 = scmp.eq.s32.totalorder %s42, 7
      %p284 = por %p282, %p283
      %p286 = scmp.ne.s32.totalorder %s271, %s285
      %p287 = scmp.eq.s32.totalorder %s42, 0
      %p288 = por %p286, %p287
      %s289 = ssub.s32 %s43, %s55
      %p290 = scmp.eq.s32.totalorder %s289, 0
      %s292 = sadd.s32 %s291, 1
      %s293 = scalar_select %p290, %s291, %s292
      %p296 = pneg %p290
      %p297 = scmp.eq.s32.totalorder %s36, 7
      %p298 = por %p296, %p297
      %p299 = scmp.ne.s32.totalorder %s291, %s294
      %p300 = scmp.eq.s32.totalorder %s36, 0
      %p301 = por %p299, %p300
      %p302 = scmp.ne.s32.totalorder %s291, %s294
      %p303 = scmp.eq.s32.totalorder %s41, 7
      %p304 = por %p302, %p303
      %p305 = scmp.ne.s32.totalorder %s294, %s295
      %p306 = scmp.eq.s32.totalorder %s41, 0
      %p307 = por %p305, %p306
      %p308 = scmp.ne.s32.totalorder %s294, %s295
      %p309 = scmp.eq.s32.totalorder %s42, 7
      %p310 = por %p308, %p309
      %p312 = scmp.ne.s32.totalorder %s295, %s311
      %p313 = scmp.eq.s32.totalorder %s42, 0
      %p314 = por %p312, %p313
      %p315 = scmp.le.s32.totalorder 1, %s36
      %p316 = scmp.lt.s32.totalorder %s36, 9
      %p317 = pnand %p315, %p316
      %p318 = pneg %p317
      // Predicated region
      $region9: #{tpu_custom_call.1} parent=5 // pred_check
        _
      $region10: #{tpu_custom_call.1} parent=5 // pred_check_branch
        %320 = sbr.rel (%p317) target = $region12
      $region11: #{tpu_custom_call.1} parent=5 // pred_region
        %s321 = ssub.s32 %s36, 1
        // Predicated region
        $region13: #{tpu_custom_call.1} parent=11 // pred_check
          %p322 = pneg %p197
        $region14: #{tpu_custom_call.1} parent=11 // pred_check_branch
          %324 = sbr.rel (%p322) target = $region16
        $region15: #{tpu_custom_call.1} parent=11 // pred_region
          _
        $region16: #{tpu_custom_call.1} parent=11 // pred_fallthru
          _
        // Predicated region
        $region17: #{tpu_custom_call.1} parent=11 // pred_check
          %p325 = pneg %p218
        $region18: #{tpu_custom_call.1} parent=11 // pred_check_branch
          %327 = sbr.rel (%p325) target = $region20
        $region19: #{tpu_custom_call.1} parent=11 // pred_region
          %s329 = ssub.s32 1024, 1024
          %330 = vsyncadd [#allocation14], %s329
          %s331 = sshll.u32 [#allocation13], 4
          %s332 = int_to_ptr.vmem [resolvable:$true] %s331
          %337 = dma.hbm_to_vmem [thread:$0]  %s7, 1024, %s332, [#allocation14], 64, 64, 4
        $region20: #{tpu_custom_call.1} parent=11 // pred_fallthru
          _
        // Predicated region
        $region21: #{tpu_custom_call.1} parent=11 // pred_check
          %p338 = pneg %p239
        $region22: #{tpu_custom_call.1} parent=11 // pred_check_branch
          %340 = sbr.rel (%p338) target = $region24
        $region23: #{tpu_custom_call.1} parent=11 // pred_region
          _
        $region24: #{tpu_custom_call.1} parent=11 // pred_fallthru
          _
        // Predicated region
        $region25: #{tpu_custom_call.1} parent=11 // pred_check
          %p341 = pneg %p260
        $region26: #{tpu_custom_call.1} parent=11 // pred_check_branch
          %343 = sbr.rel (%p341) target = $region28
        $region27: #{tpu_custom_call.1} parent=11 // pred_region
          %s345 = ssub.s32 1024, 1024
          %346 = vsyncadd [#allocation14], %s345
          %s347 = sshll.u32 [#allocation15], 4
          %s348 = int_to_ptr.vmem [resolvable:$true] %s347
          %353 = dma.hbm_to_vmem [thread:$0]  %s9, 1024, %s348, [#allocation14], 64, 64, 4
        $region28: #{tpu_custom_call.1} parent=11 // pred_fallthru
          _
        // Predicated region
        $region29: #{tpu_custom_call.1} parent=11 // pred_check
          %p354 = pneg %p281
        $region30: #{tpu_custom_call.1} parent=11 // pred_check_branch
          %356 = sbr.rel (%p354) target = $region32
        $region31: #{tpu_custom_call.1} parent=11 // pred_region
          _
        $region32: #{tpu_custom_call.1} parent=11 // pred_fallthru
          _
      $region12: #{tpu_custom_call.1} parent=5 // pred_fallthru
        _
      %p357 = scmp.lt.s32.totalorder %s36, 8
      // Predicated region
      $region33: #{tpu_custom_call.1} parent=5 // pred_check
        %p358 = pneg %p357
      $region34: #{tpu_custom_call.1} parent=5 // pred_check_branch
        %360 = sbr.rel (%p358) target = $region36
      $region35: #{tpu_custom_call.1} parent=5 // pred_region
        // Predicated region
        $region37: #{tpu_custom_call.1} parent=35 // pred_check
          %p361 = pneg %p76
        $region38: #{tpu_custom_call.1} parent=35 // pred_check_branch
          %363 = sbr.rel (%p361) target = $region40
        $region39: #{tpu_custom_call.1} parent=35 // pred_region
          %s364 = sld [smem:[#allocation4 + %s43]]
          %s365 = sadd.s32 %s364, %s44
          %p366 = scmp.lt.s32.totalorder %s365, 1
          %s367 = scalar_select %p366, %s365, 1
          %p368 = scmp.lt.s32.totalorder %s367, 1
          %s369 = scalar_select %p368, %s367, 1
          %s370 = scalar_lea.vmem %s2, %s369
          %s371 = sld [smem:[#allocation4 + %s43]]
          %s372 = sadd.s32 %s371, %s44
          %p373 = scmp.lt.s32.totalorder %s372, 1
          %s374 = scalar_select %p373, %s372, 1
        $region40: #{tpu_custom_call.1} parent=35 // pred_fallthru
          _
        // Predicated region
        $region41: #{tpu_custom_call.1} parent=35 // pred_check
          %p375 = pneg %p110
        $region42: #{tpu_custom_call.1} parent=35 // pred_check_branch
          %377 = sbr.rel (%p375) target = $region44
        $region43: #{tpu_custom_call.1} parent=35 // pred_region
          %s378 = sand.u32 %s100, 1
          %s379 = scalar_lea.sflag [#allocation8], %s378
          %s380 = sand.u32 %s100, 1
          %s381 = smul.addr %s380, 128
          %s382 = scalar_lea.vmem [#allocation7], %s381
          %s383 = sld [smem:[#allocation4 + %s43]]
          %s384 = sadd.s32 %s383, %s44
          %p385 = scmp.lt.s32.totalorder %s384, 1
          %s386 = scalar_select %p385, %s384, 1
          %s387 = smul.u32 16, %s386
          %s389 = ssub.s32 2048, 2048
          %390 = vsyncadd %s379, %s389
          %s391 = smul.addr %s387, 128
          %s392 = scalar_lea.hbm %s3, %s391
          %s393 = sshll.u32 %s382, 4
          %s394 = int_to_ptr.vmem [resolvable:$true] %s393
          %399 = dma.hbm_to_vmem [thread:$0]  %s392, 2048, %s394, %s379, 128, 128, 8
        $region44: #{tpu_custom_call.1} parent=35 // pred_fallthru
          _
        // Predicated region
        $region45: #{tpu_custom_call.1} parent=35 // pred_check
          %p400 = pneg %p144
        $region46: #{tpu_custom_call.1} parent=35 // pred_check_branch
          %402 = sbr.rel (%p400) target = $region48
        $region47: #{tpu_custom_call.1} parent=35 // pred_region
          %s403 = sand.u32 %s36, 1
          %s404 = scalar_lea.sflag [#allocation11], %s403
          %s405 = sand.u32 %s134, 1
          %s406 = smul.addr %s405, 128
          %s407 = scalar_lea.vmem [#allocation10], %s406
          %s408 = sld [smem:[#allocation4 + %s43]]
          %s409 = sadd.s32 %s408, %s44
          %p410 = scmp.lt.s32.totalorder %s409, 1
          %s411 = scalar_select %p410, %s409, 1
          %s412 = smul.u32 16, %s411
          %s414 = ssub.s32 2048, 2048
          %415 = vsyncadd %s404, %s414
          %s416 = smul.addr %s412, 128
          %s417 = scalar_lea.hbm %s4, %s416
          %s418 = sshll.u32 %s407, 4
          %s419 = int_to_ptr.vmem [resolvable:$true] %s418
          %424 = dma.hbm_to_vmem [thread:$0]  %s417, 2048, %s419, %s404, 128, 128, 8
        $region48: #{tpu_custom_call.1} parent=35 // pred_fallthru
          _
        // Predicated region
        $region49: #{tpu_custom_call.1} parent=35 // pred_check
          %p425 = pneg %p170
        $region50: #{tpu_custom_call.1} parent=35 // pred_check_branch
          %427 = sbr.rel (%p425) target = $region52
        $region51: #{tpu_custom_call.1} parent=35 // pred_region
          %s428 = sand.u32 %s36, 1
          %s429 = scalar_lea.sflag [#allocation11], %s428
          %s430 = sand.u32 %s160, 1
          %s431 = smul.addr %s430, 16
          %s432 = scalar_lea.vmem [#allocation12], %s431
          %s433 = smul.u32 2, %s43
          %s435 = ssub.s32 256, 256
          %436 = vsyncadd %s429, %s435
          %s437 = smul.addr %s433, 128
          %s438 = scalar_lea.hbm %s5, %s437
          %s439 = sshll.u32 %s432, 4
          %s440 = int_to_ptr.vmem [resolvable:$true] %s439
          %445 = dma.hbm_to_vmem [thread:$0]  %s438, 256, %s440, %s429, 128, 128, 8
        $region52: #{tpu_custom_call.1} parent=35 // pred_fallthru
          _
      $region36: #{tpu_custom_call.1} parent=5 // pred_fallthru
        _
      %p446 = scmp.le.s32.totalorder 1, %s36
      %p447 = scmp.lt.s32.totalorder %s36, 9
      %p448 = pnand %p446, %p447
      %p449 = pneg %p448
      // Predicated region
      $region53: #{tpu_custom_call.1} parent=5 // pred_check
        _
      $region54: #{tpu_custom_call.1} parent=5 // pred_check_branch
        %451 = sbr.rel (%p448) target = $region56
      $region55: #{tpu_custom_call.1} parent=5 // pred_region
        %s452 = ssub.s32 %s36, 1
        %s453 = sand.u32 %s103, 1
        %s454 = scalar_lea.sflag [#allocation8], %s453
        %s455 = sand.u32 %s103, 1
        %s456 = smul.addr %s455, 128
        %s457 = scalar_lea.vmem [#allocation7], %s456
        // Predicated region
        $region57: #{tpu_custom_call.1} parent=55 // pred_check
          %p458 = pneg %p116
        $region58: #{tpu_custom_call.1} parent=55 // pred_check_branch
          %460 = sbr.rel (%p458) target = $region60
        $region59: #{tpu_custom_call.1} parent=55 // pred_region
          %461 = dma.done %s454, 2048
        $region60: #{tpu_custom_call.1} parent=55 // pred_fallthru
          _
        %s462 = sand.u32 %s41, 1
        %s463 = scalar_lea.sflag [#allocation11], %s462
        %s464 = sand.u32 %s137, 1
        %s465 = smul.addr %s464, 128
        %s466 = scalar_lea.vmem [#allocation10], %s465
        // Predicated region
        $region61: #{tpu_custom_call.1} parent=55 // pred_check
          %p467 = pneg %p150
        $region62: #{tpu_custom_call.1} parent=55 // pred_check_branch
          %469 = sbr.rel (%p467) target = $region64
        $region63: #{tpu_custom_call.1} parent=55 // pred_region
          %470 = dma.done %s463, 2048
        $region64: #{tpu_custom_call.1} parent=55 // pred_fallthru
          _
        %s471 = sand.u32 %s41, 1
        %s472 = scalar_lea.sflag [#allocation11], %s471
        %s473 = sand.u32 %s163, 1
        %s474 = smul.addr %s473, 16
        %s475 = scalar_lea.vmem [#allocation12], %s474
        // Predicated region
        $region65: #{tpu_custom_call.1} parent=55 // pred_check
          %p476 = pneg %p176
        $region66: #{tpu_custom_call.1} parent=55 // pred_check_branch
          %478 = sbr.rel (%p476) target = $region68
        $region67: #{tpu_custom_call.1} parent=55 // pred_region
          %479 = dma.done %s472, 256
        $region68: #{tpu_custom_call.1} parent=55 // pred_fallthru
          _
        // Predicated region
        $region69: #{tpu_custom_call.1} parent=55 // pred_check
          %p480 = pneg %p218
        $region70: #{tpu_custom_call.1} parent=55 // pred_check_branch
          %482 = sbr.rel (%p480) target = $region72
        $region71: #{tpu_custom_call.1} parent=55 // pred_region
          %483 = dma.done [#allocation14], 1024
        $region72: #{tpu_custom_call.1} parent=55 // pred_fallthru
          _
        // Predicated region
        $region73: #{tpu_custom_call.1} parent=55 // pred_check
          %p484 = pneg %p260
        $region74: #{tpu_custom_call.1} parent=55 // pred_check_branch
          %486 = sbr.rel (%p484) target = $region76
        $region75: #{tpu_custom_call.1} parent=55 // pred_region
          %487 = dma.done [#allocation14], 1024
        $region76: #{tpu_custom_call.1} parent=55 // pred_fallthru
          _
        %s488 = sld [smem:[#allocation4 + %s45]]
        %s489 = sadd.s32 %s488, %s46
        %p490 = scmp.lt.s32.totalorder %s489, 1
        %s491 = scalar_select %p490, %s489, 1
        %p492 = scmp.lt.s32.totalorder %s491, 1
        %s493 = scalar_select %p492, %s491, 1
        %s494 = scalar_lea.vmem %s2, %s493
        %p495 = pneg %p82
        %p496 = pneg %p79
        %s497 = sand.u32 %s103, 1
        %s498 = scalar_lea.sflag [#allocation8], %s497
        %s499 = sand.u32 %s103, 1
        %s500 = smul.addr %s499, 128
        %s501 = scalar_lea.vmem [#allocation7], %s500
        %p502 = pneg %p116
        %p503 = pneg %p113
        %s504 = sand.u32 %s41, 1
        %s505 = scalar_lea.sflag [#allocation11], %s504
        %s506 = sand.u32 %s137, 1
        %s507 = smul.addr %s506, 128
        %s508 = scalar_lea.vmem [#allocation10], %s507
        %p509 = pneg %p150
        %p510 = pneg %p147
        %s511 = sand.u32 %s41, 1
        %s512 = scalar_lea.sflag [#allocation11], %s511
        %s513 = sand.u32 %s163, 1
        %s514 = smul.addr %s513, 16
        %s515 = scalar_lea.vmem [#allocation12], %s514
        %p516 = pneg %p176
        %p517 = pneg %p173
        %p518 = pneg %p197
        %p519 = pneg %p194
        %p520 = pneg %p218
        %p521 = pneg %p215
        %p522 = pneg %p239
        %p523 = pneg %p236
        %p524 = pneg %p260
        %p525 = pneg %p257
        %p526 = pneg %p281
        %p527 = pneg %p278
        %p528 = pneg %p307
        %p529 = pneg %p304
        %s530 = sand.u32 %s294, 1
        %s531 = scalar_lea.sflag [#allocation9], %s530
        %s532 = sand.u32 %s294, 1
        %s533 = smul.addr %s532, 16
        %s534 = scalar_lea.vmem [#allocation16], %s533
        %s535 = sld [smem:[#allocation4 + %s45]]
        %s536 = sadd.s32 %s535, %s46
        %p537 = scmp.lt.s32.totalorder %s536, 1
        %s538 = scalar_select %p537, %s536, 1
        %p539 = scmp.lt.s32.totalorder %s538, 1
        %s540 = scalar_select %p539, %s538, 1
        %s541 = scalar_lea.vmem %s2, %s540
        %s542 = sld [smem:[#allocation4 + %s45]]
        %s543 = sadd.s32 %s542, %s46
        %p544 = scmp.lt.s32.totalorder %s543, 1
        %s545 = scalar_select %p544, %s543, 1
        %s546 = sld [smem:[#allocation4 + %s45]]
        %s547 = sadd.s32 %s546, %s46
        %p548 = scmp.lt.s32.totalorder %s547, 1
        %s549 = scalar_select %p548, %s547, 1
        %s550 = smul.u32 16, %s549
        %s551 = sld [smem:[#allocation4 + %s45]]
        %s552 = sadd.s32 %s551, %s46
        %p553 = scmp.lt.s32.totalorder %s552, 1
        %s554 = scalar_select %p553, %s552, 1
        %s555 = smul.u32 16, %s554
        %s556 = smul.u32 2, %s45
        %s557 = smul.u32 2, %s45
        %p559 = scmp.eq.s32.totalorder %s46, 0
        // Predicated region
        $region77: #{tpu_custom_call.1} parent=55 // pred_check
          %p560 = pneg %p559
        $region78: #{tpu_custom_call.1} parent=55 // pred_check_branch
          %562 = sbr.rel (%p560) target = $region80
        $region79: #{tpu_custom_call.1} parent=55 // pred_region
          %563 = vst [vmem:[#allocation2] sm:$0xff] 0.0
          %564 = vst [vmem:[#allocation2 + $0x8] sm:$0xff] 0.0
        $region80: #{tpu_custom_call.1} parent=55 // pred_fallthru
          _
        %s565 = sld [smem:[#allocation5 + %s45]]
        %p566 = scmp.lt.s32.totalorder %s46, %s565
        // Predicated region
        $region81: #{tpu_custom_call.1} parent=55 // pred_check
          %p567 = pneg %p566
        $region82: #{tpu_custom_call.1} parent=55 // pred_check_branch
          %569 = sbr.rel (%p567) target = $region84
        $region83: #{tpu_custom_call.1} parent=55 // pred_region
          %v570 = vld [vmem:[%s457] sm:$0xff]
          %v571 = vld [vmem:[%s457 + $0x8] sm:$0xff]
          %v572 = vld [vmem:[%s457 + $0x10] sm:$0xff]
          %v573 = vld [vmem:[%s457 + $0x18] sm:$0xff]
          %v574 = vld [vmem:[%s457 + $0x20] sm:$0xff]
          %v575 = vld [vmem:[%s457 + $0x28] sm:$0xff]
          %v576 = vld [vmem:[%s457 + $0x30] sm:$0xff]
          %v577 = vld [vmem:[%s457 + $0x38] sm:$0xff]
          %v578 = vld [vmem:[%s457 + $0x40] sm:$0xff]
          %v579 = vld [vmem:[%s457 + $0x48] sm:$0xff]
          %v580 = vld [vmem:[%s457 + $0x50] sm:$0xff]
          %v581 = vld [vmem:[%s457 + $0x58] sm:$0xff]
          %v582 = vld [vmem:[%s457 + $0x60] sm:$0xff]
          %v583 = vld [vmem:[%s457 + $0x68] sm:$0xff]
          %v584 = vld [vmem:[%s457 + $0x70] sm:$0xff]
          %v585 = vld [vmem:[%s457 + $0x78] sm:$0xff]
          %v586 = vld [vmem:[%s466] sm:$0xff]
          %v587 = vld [vmem:[%s466 + $0x8] sm:$0xff]
          %v588 = vld [vmem:[%s466 + $0x10] sm:$0xff]
          %v589 = vld [vmem:[%s466 + $0x18] sm:$0xff]
          %v590 = vld [vmem:[%s466 + $0x20] sm:$0xff]
          %v591 = vld [vmem:[%s466 + $0x28] sm:$0xff]
          %v592 = vld [vmem:[%s466 + $0x30] sm:$0xff]
          %v593 = vld [vmem:[%s466 + $0x38] sm:$0xff]
          %v594 = vld [vmem:[%s466 + $0x40] sm:$0xff]
          %v595 = vld [vmem:[%s466 + $0x48] sm:$0xff]
          %v596 = vld [vmem:[%s466 + $0x50] sm:$0xff]
          %v597 = vld [vmem:[%s466 + $0x58] sm:$0xff]
          %v598 = vld [vmem:[%s466 + $0x60] sm:$0xff]
          %v599 = vld [vmem:[%s466 + $0x68] sm:$0xff]
          %v600 = vld [vmem:[%s466 + $0x70] sm:$0xff]
          %v601 = vld [vmem:[%s466 + $0x78] sm:$0xff]
          %v602 = vadd.f32 %v570, %v586
          %v603 = vadd.f32 %v571, %v587
          %v604 = vadd.f32 %v572, %v588
          %v605 = vadd.f32 %v573, %v589
          %v606 = vadd.f32 %v574, %v590
          %v607 = vadd.f32 %v575, %v591
          %v608 = vadd.f32 %v576, %v592
          %v609 = vadd.f32 %v577, %v593
          %v610 = vadd.f32 %v578, %v594
          %v611 = vadd.f32 %v579, %v595
          %v612 = vadd.f32 %v580, %v596
          %v613 = vadd.f32 %v581, %v597
          %v614 = vadd.f32 %v582, %v598
          %v615 = vadd.f32 %v583, %v599
          %v616 = vadd.f32 %v584, %v600
          %v617 = vadd.f32 %v585, %v601
          %v618 = vmax.f32 %v602, 0.0
          %v619 = vmax.f32 %v603, 0.0
          %v620 = vmax.f32 %v604, 0.0
          %v621 = vmax.f32 %v605, 0.0
          %v622 = vmax.f32 %v606, 0.0
          %v623 = vmax.f32 %v607, 0.0
          %v624 = vmax.f32 %v608, 0.0
          %v625 = vmax.f32 %v609, 0.0
          %v626 = vmax.f32 %v610, 0.0
          %v627 = vmax.f32 %v611, 0.0
          %v628 = vmax.f32 %v612, 0.0
          %v629 = vmax.f32 %v613, 0.0
          %v630 = vmax.f32 %v614, 0.0
          %v631 = vmax.f32 %v615, 0.0
          %v632 = vmax.f32 %v616, 0.0
          %v633 = vmax.f32 %v617, 0.0
          %v634 = vld [vmem:[%s541] sm:$0x1]
          %s635 = smul.u32 %s45, 16
          %v636 = vstv %s635
          %v637 = vsub.s32 %v634, %v636
          %v638 = vlaneseq
          %v639 = vshrl.u32 %v638, 7
          %v640 = vadd.s32 %v639, 8
          %v641 = vlaneseq
          %v642 = vshrl.u32 %v641, 7
          %v643 = vsub.s32 0, %v642
          %v644 = vrot.slane %v637, %v643
          %vm645 = vcmp.eq.s32.totalorder %v639, %v644
          %vm646 = vcmp.eq.s32.totalorder %v640, %v644
          %v647 = vsel %vm645, 1, 0
          %v648 = vsel %vm646, 1, 0
          %v649 = vcvt.s32.f32 %v647
          %v650 = vcvt.s32.f32 %v648
          %v651 = vpack.c.bf16 %v650, %v649
          %v652 = vld [vmem:[#allocation2] sm:$0xff]
          %v653 = vld [vmem:[#allocation2 + $0x8] sm:$0xff]
          %v654 = vpack.c.bf16 %v619, %v618
          %v655 = vpack.c.bf16 %v621, %v620
          %v656 = vpack.c.bf16 %v623, %v622
          %v657 = vpack.c.bf16 %v625, %v624
          %v658 = vpack.c.bf16 %v627, %v626
          %v659 = vpack.c.bf16 %v629, %v628
          %v660 = vpack.c.bf16 %v631, %v630
          %v661 = vpack.c.bf16 %v633, %v632
          %662 = vmatprep.subr.bf16.mxu0 0
          %663 = vmatpush1.bf16.msra.mxu0 %v661
          %664 = vmatprep.subr.bf16.mxu0 0
          %665 = vmatpush1.bf16.msra.mxu0 %v660
          %666 = vmatprep.subr.bf16.mxu0 0
          %667 = vmatpush1.bf16.msra.mxu0 %v659
          %668 = vmatprep.subr.bf16.mxu0 0
          %669 = vmatpush1.bf16.msra.mxu0 %v658
          %670 = vmatprep.subr.bf16.mxu0 0
          %671 = vmatpush1.bf16.msra.mxu0 %v657
          %672 = vmatprep.subr.bf16.mxu0 0
          %673 = vmatpush1.bf16.msra.mxu0 %v656
          %674 = vmatprep.subr.bf16.mxu0 0
          %675 = vmatpush1.bf16.msra.mxu0 %v655
          %676 = vmatprep.subr.bf16.mxu0 0
          %677 = vmatpush1.bf16.msra.mxu0 %v654
          %678 = vmatprep.subr.bf16.mxu0 0
          %679 = vmatpush2.bf16.msra.mxu0 0
          %680 = vmatprep.subr.bf16.mxu0 0
          %681 = vmatpush2.bf16.msra.mxu0 0
          %682 = vmatprep.subr.bf16.mxu0 0
          %683 = vmatpush2.bf16.msra.mxu0 0
          %684 = vmatprep.subr.bf16.mxu0 0
          %685 = vmatpush2.bf16.msra.mxu0 0
          %686 = vmatprep.subr.bf16.mxu0 0
          %687 = vmatpush2.bf16.msra.mxu0 0
          %688 = vmatprep.subr.bf16.mxu0 0
          %689 = vmatpush2.bf16.msra.mxu0 0
          %690 = vmatprep.subr.bf16.mxu0 0
          %691 = vmatpush2.bf16.msra.mxu0 0
          %692 = vmatprep.subr.bf16.mxu0 0
          %693 = vmatpush2.bf16.msra.mxu0 0
          %694 = vmatprep.mubr.bf16.mxu0 0
          %695 = vmatmul.mubr.bf16.gmra.mxu0 %v651
          %v696 = vpop.f32.mrf.mxu0
          %v697 = vadd.f32 0.0, %v696
          %v698 = vpop.f32.mrf.mxu0
          %v699 = vpop.f32.mrf.mxu0
          %v700 = vadd.f32 0.0, %v699
          %v701 = vpop.f32.mrf.mxu0
          %702 = vdwg.mxu0
          %v703 = vadd.f32 %v652, %v697
          %v704 = vadd.f32 %v653, %v700
          %705 = vst [vmem:[#allocation2] sm:$0xff] %v703
          %706 = vst [vmem:[#allocation2 + $0x8] sm:$0xff] %v704
        $region84: #{tpu_custom_call.1} parent=55 // pred_fallthru
          _
        %p707 = scmp.eq.s32.totalorder %s46, 1
        // Predicated region
        $region85: #{tpu_custom_call.1} parent=55 // pred_check
          %p708 = pneg %p707
        $region86: #{tpu_custom_call.1} parent=55 // pred_check_branch
          %710 = sbr.rel (%p708) target = $region88
        $region87: #{tpu_custom_call.1} parent=55 // pred_region
          %s711 = sld [smem:[#allocation6]]
          %s712 = sadd.f32 %s711, 1.0
          %v713 = vld [vmem:[%s475] sm:$0xff]
          %v714 = vld [vmem:[%s475 + $0x8] sm:$0xff]
          %v715 = vstv %s712
          %v716 = vmul.f32 %v715, %v713
          %v717 = vmul.f32 %v715, %v714
          %v718 = vld [vmem:[#allocation2] sm:$0xff]
          %v719 = vld [vmem:[#allocation2 + $0x8] sm:$0xff]
          %v720 = vadd.f32 %v716, %v718
          %v721 = vadd.f32 %v717, %v719
          %v722 = vpack.c.bf16 %v721, %v720
          %v723 = vld [vmem:[#allocation13] sm:$0xf]
          %v724 = vld [vmem:[#allocation13 + $0x4] sm:$0xf]
          %v725 = vld [vmem:[#allocation13 + $0x8] sm:$0xf]
          %v726 = vld [vmem:[#allocation13 + $0xc] sm:$0xf]
          %v727 = vld [vmem:[#allocation13 + $0x10] sm:$0xf]
          %v728 = vld [vmem:[#allocation13 + $0x14] sm:$0xf]
          %v729 = vld [vmem:[#allocation13 + $0x18] sm:$0xf]
          %v730 = vld [vmem:[#allocation13 + $0x1c] sm:$0xf]
          %v731 = vld [vmem:[#allocation13 + $0x20] sm:$0xf]
          %v732 = vld [vmem:[#allocation13 + $0x24] sm:$0xf]
          %v733 = vld [vmem:[#allocation13 + $0x28] sm:$0xf]
          %v734 = vld [vmem:[#allocation13 + $0x2c] sm:$0xf]
          %v735 = vld [vmem:[#allocation13 + $0x30] sm:$0xf]
          %v736 = vld [vmem:[#allocation13 + $0x34] sm:$0xf]
          %v737 = vld [vmem:[#allocation13 + $0x38] sm:$0xf]
          %v738 = vld [vmem:[#allocation13 + $0x3c] sm:$0xf]
          %v739 = vld [vmem:[%s8] sm:$0x1]
          %v741 = vlaneseq
          %v742 = vshrl.u32 %v741, 7
          %v743 = vsub.s32 0, %v742
          %v744 = vrot.slane %v739, %v743
          %v762 = vunpack.c.l.b16 %v723
          %v763 = vunpack.c.l.b16 %v724
          %v764 = vunpack.c.l.b16 %v725
          %v765 = vunpack.c.l.b16 %v726
          %v766 = vunpack.c.l.b16 %v727
          %v767 = vunpack.c.l.b16 %v728
          %v768 = vunpack.c.l.b16 %v729
          %v769 = vunpack.c.l.b16 %v730
          %v770 = vunpack.c.l.b16 %v731
          %v771 = vunpack.c.l.b16 %v732
          %v772 = vunpack.c.l.b16 %v733
          %v773 = vunpack.c.l.b16 %v734
          %v774 = vunpack.c.l.b16 %v735
          %v775 = vunpack.c.l.b16 %v736
          %v776 = vunpack.c.l.b16 %v737
          %v777 = vunpack.c.l.b16 %v738
          %v778 = vpack.c.b16 %v763, %v762
          %v779 = vpack.c.b16 %v765, %v764
          %v780 = vpack.c.b16 %v767, %v766
          %v781 = vpack.c.b16 %v769, %v768
          %v782 = vpack.c.b16 %v771, %v770
          %v783 = vpack.c.b16 %v773, %v772
          %v784 = vpack.c.b16 %v775, %v774
          %v785 = vpack.c.b16 %v777, %v776
          %794 = vmatprep.subr.bf16.mxu0 0
          %795 = vmatpush1.bf16.msra.mxu0 %v785
          %796 = vmatprep.subr.bf16.mxu0 0
          %797 = vmatpush1.bf16.msra.mxu0 %v784
          %798 = vmatprep.subr.bf16.mxu0 0
          %799 = vmatpush1.bf16.msra.mxu0 %v783
          %800 = vmatprep.subr.bf16.mxu0 0
          %801 = vmatpush1.bf16.msra.mxu0 %v782
          %802 = vmatprep.subr.bf16.mxu0 0
          %803 = vmatpush1.bf16.msra.mxu0 %v781
          %804 = vmatprep.subr.bf16.mxu0 0
          %805 = vmatpush1.bf16.msra.mxu0 %v780
          %806 = vmatprep.subr.bf16.mxu0 0
          %807 = vmatpush1.bf16.msra.mxu0 %v779
          %808 = vmatprep.subr.bf16.mxu0 0
          %809 = vmatpush1.bf16.msra.mxu0 %v778
          %810 = vmatprep.subr.bf16.mxu0 0
          %811 = vmatpush2.bf16.msra.mxu0 0
          %812 = vmatprep.subr.bf16.mxu0 0
          %813 = vmatpush2.bf16.msra.mxu0 0
          %814 = vmatprep.subr.bf16.mxu0 0
          %815 = vmatpush2.bf16.msra.mxu0 0
          %816 = vmatprep.subr.bf16.mxu0 0
          %817 = vmatpush2.bf16.msra.mxu0 0
          %818 = vmatprep.subr.bf16.mxu0 0
          %819 = vmatpush2.bf16.msra.mxu0 0
          %820 = vmatprep.subr.bf16.mxu0 0
          %821 = vmatpush2.bf16.msra.mxu0 0
          %822 = vmatprep.subr.bf16.mxu0 0
          %823 = vmatpush2.bf16.msra.mxu0 0
          %824 = vmatprep.subr.bf16.mxu0 0
          %825 = vmatpush2.bf16.msra.mxu0 0
          %826 = vmatprep.mubr.bf16.mxu0 0
          %827 = vmatmul.mubr.bf16.gmra.mxu0 %v722
          %v828 = vpop.f32.mrf.mxu0
          %v829 = vadd.f32 %v744, %v828
          %v830 = vpop.f32.mrf.mxu0
          %v831 = vpop.f32.mrf.mxu0
          %v832 = vadd.f32 %v744, %v831
          %v833 = vpop.f32.mrf.mxu0
          %834 = vdwg.mxu0
          %v835 = vmax.f32 %v829, 0.0
          %v836 = vmax.f32 %v832, 0.0
          %v837 = vpack.c.bf16 %v836, %v835
          %v838 = vld [vmem:[#allocation15] sm:$0xf]
          %v839 = vld [vmem:[#allocation15 + $0x4] sm:$0xf]
          %v840 = vld [vmem:[#allocation15 + $0x8] sm:$0xf]
          %v841 = vld [vmem:[#allocation15 + $0xc] sm:$0xf]
          %v842 = vld [vmem:[#allocation15 + $0x10] sm:$0xf]
          %v843 = vld [vmem:[#allocation15 + $0x14] sm:$0xf]
          %v844 = vld [vmem:[#allocation15 + $0x18] sm:$0xf]
          %v845 = vld [vmem:[#allocation15 + $0x1c] sm:$0xf]
          %v846 = vld [vmem:[#allocation15 + $0x20] sm:$0xf]
          %v847 = vld [vmem:[#allocation15 + $0x24] sm:$0xf]
          %v848 = vld [vmem:[#allocation15 + $0x28] sm:$0xf]
          %v849 = vld [vmem:[#allocation15 + $0x2c] sm:$0xf]
          %v850 = vld [vmem:[#allocation15 + $0x30] sm:$0xf]
          %v851 = vld [vmem:[#allocation15 + $0x34] sm:$0xf]
          %v852 = vld [vmem:[#allocation15 + $0x38] sm:$0xf]
          %v853 = vld [vmem:[#allocation15 + $0x3c] sm:$0xf]
          %v854 = vld [vmem:[%s10] sm:$0x1]
          %v856 = vlaneseq
          %v857 = vshrl.u32 %v856, 7
          %v858 = vsub.s32 0, %v857
          %v859 = vrot.slane %v854, %v858
          %v877 = vunpack.c.l.b16 %v838
          %v878 = vunpack.c.l.b16 %v839
          %v879 = vunpack.c.l.b16 %v840
          %v880 = vunpack.c.l.b16 %v841
          %v881 = vunpack.c.l.b16 %v842
          %v882 = vunpack.c.l.b16 %v843
          %v883 = vunpack.c.l.b16 %v844
          %v884 = vunpack.c.l.b16 %v845
          %v885 = vunpack.c.l.b16 %v846
          %v886 = vunpack.c.l.b16 %v847
          %v887 = vunpack.c.l.b16 %v848
          %v888 = vunpack.c.l.b16 %v849
          %v889 = vunpack.c.l.b16 %v850
          %v890 = vunpack.c.l.b16 %v851
          %v891 = vunpack.c.l.b16 %v852
          %v892 = vunpack.c.l.b16 %v853
          %v893 = vpack.c.b16 %v878, %v877
          %v894 = vpack.c.b16 %v880, %v879
          %v895 = vpack.c.b16 %v882, %v881
          %v896 = vpack.c.b16 %v884, %v883
          %v897 = vpack.c.b16 %v886, %v885
          %v898 = vpack.c.b16 %v888, %v887
          %v899 = vpack.c.b16 %v890, %v889
          %v900 = vpack.c.b16 %v892, %v891
          %909 = vmatprep.subr.bf16.mxu0 0
          %910 = vmatpush1.bf16.msra.mxu0 %v900
          %911 = vmatprep.subr.bf16.mxu0 0
          %912 = vmatpush1.bf16.msra.mxu0 %v899
          %913 = vmatprep.subr.bf16.mxu0 0
          %914 = vmatpush1.bf16.msra.mxu0 %v898
          %915 = vmatprep.subr.bf16.mxu0 0
          %916 = vmatpush1.bf16.msra.mxu0 %v897
          %917 = vmatprep.subr.bf16.mxu0 0
          %918 = vmatpush1.bf16.msra.mxu0 %v896
          %919 = vmatprep.subr.bf16.mxu0 0
          %920 = vmatpush1.bf16.msra.mxu0 %v895
          %921 = vmatprep.subr.bf16.mxu0 0
          %922 = vmatpush1.bf16.msra.mxu0 %v894
          %923 = vmatprep.subr.bf16.mxu0 0
          %924 = vmatpush1.bf16.msra.mxu0 %v893
          %925 = vmatprep.subr.bf16.mxu0 0
          %926 = vmatpush2.bf16.msra.mxu0 0
          %927 = vmatprep.subr.bf16.mxu0 0
          %928 = vmatpush2.bf16.msra.mxu0 0
          %929 = vmatprep.subr.bf16.mxu0 0
          %930 = vmatpush2.bf16.msra.mxu0 0
          %931 = vmatprep.subr.bf16.mxu0 0
          %932 = vmatpush2.bf16.msra.mxu0 0
          %933 = vmatprep.subr.bf16.mxu0 0
          %934 = vmatpush2.bf16.msra.mxu0 0
          %935 = vmatprep.subr.bf16.mxu0 0
          %936 = vmatpush2.bf16.msra.mxu0 0
          %937 = vmatprep.subr.bf16.mxu0 0
          %938 = vmatpush2.bf16.msra.mxu0 0
          %939 = vmatprep.subr.bf16.mxu0 0
          %940 = vmatpush2.bf16.msra.mxu0 0
          %941 = vmatprep.mubr.bf16.mxu0 0
          %942 = vmatmul.mubr.bf16.gmra.mxu0 %v837
          %v943 = vpop.f32.mrf.mxu0
          %v944 = vadd.f32 %v859, %v943
          %v945 = vpop.f32.mrf.mxu0
          %v946 = vpop.f32.mrf.mxu0
          %v947 = vadd.f32 %v859, %v946
          %v948 = vpop.f32.mrf.mxu0
          %949 = vdwg.mxu0
          %v950 = vmax.f32 %v944, 0.0
          %v951 = vmax.f32 %v947, 0.0
          %952 = vst [vmem:[%s534] sm:$0xff] %v950
          %953 = vst [vmem:[%s534 + $0x8] sm:$0xff] %v951
        $region88: #{tpu_custom_call.1} parent=55 // pred_fallthru
          _
        %s954 = sand.u32 %s294, 1
        %s955 = scalar_lea.sflag [#allocation9], %s954
        %s956 = sand.u32 %s294, 1
        %s957 = smul.addr %s956, 16
        %s958 = scalar_lea.vmem [#allocation16], %s957
        // Predicated region
        $region89: #{tpu_custom_call.1} parent=55 // pred_check
          %p959 = pneg %p304
        $region90: #{tpu_custom_call.1} parent=55 // pred_check_branch
          %961 = sbr.rel (%p959) target = $region92
        $region91: #{tpu_custom_call.1} parent=55 // pred_region
          %s962 = smul.u32 2, %s45
          %s964 = ssub.s32 256, 256
          %965 = vsyncadd %s955, %s964
          %s966 = smul.addr %s962, 128
          %s967 = scalar_lea.hbm %s11, %s966
          %s968 = sshll.u32 %s958, 4
          %s969 = int_to_ptr.vmem [resolvable:$true] %s968
          %974 = dma.vmem_to_hbm [thread:$0]  %s969, 256, %s967, %s955, 128, 128, 8
        $region92: #{tpu_custom_call.1} parent=55 // pred_fallthru
          _
      $region56: #{tpu_custom_call.1} parent=5 // pred_fallthru
        _
      %p975 = scmp.le.s32.totalorder 2, %s36
      // Predicated region
      $region93: #{tpu_custom_call.1} parent=5 // pred_check
        %p976 = pneg %p975
      $region94: #{tpu_custom_call.1} parent=5 // pred_check_branch
        %978 = sbr.rel (%p976) target = $region96
      $region95: #{tpu_custom_call.1} parent=5 // pred_region
        %s979 = ssub.s32 %s36, 2
        // Predicated region
        $region97: #{tpu_custom_call.1} parent=95 // pred_check
          %p980 = pneg %p310
        $region98: #{tpu_custom_call.1} parent=95 // pred_check_branch
          %982 = sbr.rel (%p980) target = $region100
        $region99: #{tpu_custom_call.1} parent=95 // pred_region
          %s983 = sand.u32 %s295, 1
          %s984 = scalar_lea.sflag [#allocation9], %s983
          %s985 = sand.u32 %s295, 1
          %s986 = smul.addr %s985, 16
          %s987 = scalar_lea.vmem [#allocation16], %s986
          %988 = dma.done %s984, 256
        $region100: #{tpu_custom_call.1} parent=95 // pred_fallthru
          _
      $region96: #{tpu_custom_call.1} parent=5 // pred_fallthru
        _
    $region6: #{tpu_custom_call.1} parent=1 // loop_footer
      %s40 = sadd.s32 1, %s36
    $region7: #{tpu_custom_call.1} parent=1 // loop_footer_branch
      %35 = sbr.rel target = $region3
    $region8: #{tpu_custom_call.1} parent=1 // loop_exit
      _
    %989 = vsyncpa [#allocation8], 1
    %s990 = scalar_lea.sflag [#allocation8], 1
    %991 = vsyncpa %s990, 1
    %992 = vsyncpa [#allocation11], 1
    %s993 = scalar_lea.sflag [#allocation11], 1
    %994 = vsyncpa %s993, 1
    %995 = vsyncpa [#allocation14], 1
    %996 = vsyncpa [#allocation9], 1
    %s997 = scalar_lea.sflag [#allocation9], 1
    %998 = vsyncpa %s997, 1

</llo_original>
